<compile_context>
chip_gen: v5e
topology: v5e:2x2
jax: 0.10.0
libtpu: 0.0.40
codegen_flags: <defaults>
</compile_context>

<pallas_src>
from functools import partial

import jax
import jax.numpy as jnp
from jax.experimental import pallas as pl
from jax.experimental.pallas import tpu as pltpu

LANES = 128  # TPU vreg lane width


def _round_up(x: int, m: int) -> int:
    return ((x + m - 1) // m) * m


def _mlp_kernel(x_ref, w1_ref, b1_ref, w2_ref, b2_ref, o_ref):
    # x_ref:  (tile_b, D_in)     f32
    # w1_ref: (D_in, H_pad)      f32   (zero-padded columns)
    # b1_ref: (1, H_pad)         f32   (zero-padded)
    # w2_ref: (H_pad, D_out)     f32   (zero-padded rows)
    # b2_ref: (1, D_out)         f32
    # o_ref:  (tile_b, D_out)    f32   (last dim == full array dim)
    h = jnp.dot(x_ref[...], w1_ref[...], preferred_element_type=jnp.float32)
    h = jnp.maximum(h + b1_ref[...], 0.0)
    y = jnp.dot(h, w2_ref[...], preferred_element_type=jnp.float32)
    o_ref[...] = (y + b2_ref[...]).astype(o_ref.dtype)


def prepare_params(w1, b1, w2, b2):
    """Pad the hidden dimension to 128 lanes ONCE, at parameter-load time.

    Zero-padding is sound: ReLU(0 + 0) = 0 and the zeroed W2 rows contribute
    nothing to the output, so no column padding of the output is needed.
    """
    D_in, H = w1.shape
    D_out = w2.shape[1]
    H_pad = _round_up(H, LANES)

    w1_p = jnp.zeros((D_in, H_pad), jnp.float32).at[:, :H].set(
        w1.astype(jnp.float32))
    b1_p = jnp.zeros((1, H_pad), jnp.float32).at[:, :H].set(
        b1.astype(jnp.float32))
    w2_p = jnp.zeros((H_pad, D_out), jnp.float32).at[:H, :].set(
        w2.astype(jnp.float32))
    b2_p = b2.reshape(1, D_out).astype(jnp.float32)
    return w1_p, b1_p, w2_p, b2_p


@partial(jax.jit, static_argnames=("tile_b",))
def hooked_module_forward(x, w1_p, b1_p, w2_p, b2_p, *, tile_b: int = 2048):
    """Forward pass of HookedModule(model) where model is the 2-layer MLP.

    x:    (B, D_in) float32
    w1_p: (D_in, H_pad) f32, b1_p: (1, H_pad) f32      (from prepare_params)
    w2_p: (H_pad, D_out) f32, b2_p: (1, D_out) f32
    returns (B, D_out) float32
    """
    B, D_in = x.shape
    H_pad = w1_p.shape[1]
    D_out = w2_p.shape[1]

    # ---- batch tile selection ----------------------------------------------
    # Biggest tile that amortizes per-step overhead, but keep >= 2 grid steps
    # whenever the batch allows so v7x's two TensorCores both get work.
    B8 = _round_up(B, 8)
    if B8 >= 16:
        half = _round_up((B8 + 1) // 2, 8)
        tile = max(8, min(tile_b, half))
    else:
        tile = 8

    B_pad = _round_up(B, tile)
    x_p = x
    if B_pad != B:
        # Padded rows produce garbage that is sliced off below.
        x_p = jnp.zeros((B_pad, D_in), x.dtype).at[:B].set(x)

    grid = (B_pad // tile,)

    cost = pl.CostEstimate(
        flops=2 * B_pad * (D_in * H_pad + H_pad * D_out),
        transcendentals=0,
        bytes_accessed=4 * (B_pad * D_in + B_pad * D_out
                            + D_in * H_pad + H_pad * D_out + H_pad + D_out),
    )

    out_padded = pl.pallas_call(
        _mlp_kernel,
        out_shape=jax.ShapeDtypeStruct((B_pad, D_out), jnp.float32),
        grid=grid,
        in_specs=[
            pl.BlockSpec((tile, D_in), lambda i: (i, 0)),
            # Constant index_maps: weights/biases are DMA'd once and stay
            # resident in VMEM across all batch grid steps.
            pl.BlockSpec((D_in, H_pad), lambda i: (0, 0)),
            pl.BlockSpec((1, H_pad), lambda i: (0, 0)),
            pl.BlockSpec((H_pad, D_out), lambda i: (0, 0)),
            pl.BlockSpec((1, D_out), lambda i: (0, 0)),
        ],
        out_specs=pl.BlockSpec((tile, D_out), lambda i: (i, 0)),
        compiler_params=pltpu.CompilerParams(
            # Batch tiles are independent -> shard grid steps across both
            # v7x TensorCores (no-op on single-TC v5e/v6e).
            dimension_semantics=("parallel",)),
        cost_estimate=cost,
    )(x_p, w1_p, b1_p, w2_p, b2_p)

    # Only the batch padding (if any) needs stripping now.
    return out_padded if B_pad == B else out_padded[:B]


# TODO(synk): HookedModule.hooks() / register_forward_hook / HookInfo are
# Python-runtime hook registration with no Pallas equivalent; only the
# pass-through forward() (i.e. the wrapped model's forward) is implemented.


if __name__ == "__main__":
    key = jax.random.PRNGKey(0)
    k_x, k_w1, k_b1, k_w2, k_b2 = jax.random.split(key, 5)

    # Batch large enough to exercise the batch-tiled grid (2 steps of 512
    # rows); feature dims stay small (the wrapped MLP: 32 -> 64 -> 16).
    B, D_in, H, D_out = 1024, 32, 64, 16

    x = jax.random.normal(k_x, (B, D_in), dtype=jnp.float32)
    # Deterministic parameter init (Linear weights stored (in, out) here).
    w1 = jax.random.normal(k_w1, (D_in, H), dtype=jnp.float32) * 0.1
    b1 = jax.random.normal(k_b1, (H,), dtype=jnp.float32) * 0.1
    w2 = jax.random.normal(k_w2, (H, D_out), dtype=jnp.float32) * 0.1
    b2 = jax.random.normal(k_b2, (D_out,), dtype=jnp.float32) * 0.1

    # Pad params once at load time (hoisted out of the forward path).
    w1_p, b1_p, w2_p, b2_p = prepare_params(w1, b1, w2, b2)

    out = hooked_module_forward(x, w1_p, b1_p, w2_p, b2_p)
    out = jax.block_until_ready(out)
    assert out.shape == (B, D_out)

    # Reference: full-f32 math of the original module (same precision as the
    # kernel, which keeps f32 operands throughout).
    ref = jnp.maximum(x @ w1 + b1, 0.0) @ w2 + b2
    max_err = float(jnp.max(jnp.abs(out - ref)))
    assert jnp.allclose(out, ref, atol=2e-3, rtol=2e-3), max_err

    print("KERNEL_OK")
</pallas_src>

<mosaic_0001>
module attributes {stable_mosaic.version = 11 : i64} {
  func.func @_mlp_kernel(%arg0: i32, %arg1: memref<512x32xf32, #tpu.memory_space<vmem>>, %arg2: memref<32x128xf32, #tpu.memory_space<vmem>>, %arg3: memref<1x128xf32, #tpu.memory_space<vmem>>, %arg4: memref<128x16xf32, #tpu.memory_space<vmem>>, %arg5: memref<1x16xf32, #tpu.memory_space<vmem>>, %arg6: memref<512x16xf32, #tpu.memory_space<vmem>>) attributes {dimension_semantics = [#tpu.dimension_semantics<parallel>], iteration_bounds = array<i64: 2>, scalar_prefetch = 0 : i64, scratch_operands = 0 : i64, tpu.core_type = #tpu.core_type<tc>, window_params = [{transform_indices = @transform_0, window_bounds = array<i64: 512, 32>}, {pipeline_mode = #tpu.pipeline_mode<synchronous>, transform_indices = @transform_1, window_bounds = array<i64: 32, 128>}, {pipeline_mode = #tpu.pipeline_mode<synchronous>, transform_indices = @transform_2, window_bounds = array<i64: 1, 128>}, {pipeline_mode = #tpu.pipeline_mode<synchronous>, transform_indices = @transform_3, window_bounds = array<i64: 128, 16>}, {pipeline_mode = #tpu.pipeline_mode<synchronous>, transform_indices = @transform_4, window_bounds = array<i64: 1, 16>}, {transform_indices = @transform_5, window_bounds = array<i64: 512, 16>}]} {
    %c0 = arith.constant 0 : index
    %c0_0 = arith.constant 0 : index
    %0 = vector.load %arg1[%c0, %c0_0] : memref<512x32xf32, #tpu.memory_space<vmem>>, vector<512x32xf32>
    %c0_1 = arith.constant 0 : index
    %c0_2 = arith.constant 0 : index
    %1 = vector.load %arg2[%c0_1, %c0_2] : memref<32x128xf32, #tpu.memory_space<vmem>>, vector<32x128xf32>
    %cst = arith.constant dense<0.000000e+00> : vector<512x128xf32>
    %2 = tpu.matmul %0, %1, %cst {dimension_numbers = #tpu.dot_dimension_numbers<[1], [0], [0], [1], [0, 0, 1, 1], [], []>} : vector<512x32xf32>, vector<32x128xf32>, vector<512x128xf32> -> vector<512x128xf32>
    %c0_3 = arith.constant 0 : index
    %c0_4 = arith.constant 0 : index
    %3 = vector.load %arg3[%c0_3, %c0_4] : memref<1x128xf32, #tpu.memory_space<vmem>>, vector<1x128xf32>
    %4 = vector.broadcast %3 : vector<1x128xf32> to vector<512x128xf32>
    %5 = arith.addf %2, %4 : vector<512x128xf32>
    %cst_5 = arith.constant 0.000000e+00 : f32
    %6 = vector.broadcast %cst_5 : f32 to vector<512x128xf32>
    %7 = arith.maximumf %5, %6 : vector<512x128xf32>
    %c0_6 = arith.constant 0 : index
    %c0_7 = arith.constant 0 : index
    %8 = vector.load %arg4[%c0_6, %c0_7] : memref<128x16xf32, #tpu.memory_space<vmem>>, vector<128x16xf32>
    %cst_8 = arith.constant dense<0.000000e+00> : vector<512x16xf32>
    %9 = tpu.matmul %7, %8, %cst_8 {dimension_numbers = #tpu.dot_dimension_numbers<[1], [0], [0], [1], [0, 0, 1, 1], [], []>} : vector<512x128xf32>, vector<128x16xf32>, vector<512x16xf32> -> vector<512x16xf32>
    %c0_9 = arith.constant 0 : index
    %c0_10 = arith.constant 0 : index
    %10 = vector.load %arg5[%c0_9, %c0_10] : memref<1x16xf32, #tpu.memory_space<vmem>>, vector<1x16xf32>
    %11 = vector.broadcast %10 : vector<1x16xf32> to vector<512x16xf32>
    %12 = arith.addf %9, %11 : vector<512x16xf32>
    %c0_11 = arith.constant 0 : index
    %c0_12 = arith.constant 0 : index
    %13 = vector.load %arg6[%c0_11, %c0_12] : memref<512x16xf32, #tpu.memory_space<vmem>>, vector<512x16xf32>
    tpu.vector_store %arg6[%c0_11, %c0_12], %12 {strides = array<i32>} : memref<512x16xf32, #tpu.memory_space<vmem>>, vector<512x16xf32>,
    return
  }
  func.func @transform_0(%arg0: i32) -> (i32, i32) {
    %c0_i32 = arith.constant 0 : i32
    %c0_i32_0 = arith.constant 0 : i32
    return %arg0, %c0_i32 : i32, i32
  }
  func.func @transform_1(%arg0: i32) -> (i32, i32) {
    %c0_i32 = arith.constant 0 : i32
    %c0_i32_0 = arith.constant 0 : i32
    %c0_i32_1 = arith.constant 0 : i32
    return %c0_i32, %c0_i32_0 : i32, i32
  }
  func.func @transform_2(%arg0: i32) -> (i32, i32) {
    %c0_i32 = arith.constant 0 : i32
    %c0_i32_0 = arith.constant 0 : i32
    %c0_i32_1 = arith.constant 0 : i32
    return %c0_i32, %c0_i32_0 : i32, i32
  }
  func.func @transform_3(%arg0: i32) -> (i32, i32) {
    %c0_i32 = arith.constant 0 : i32
    %c0_i32_0 = arith.constant 0 : i32
    %c0_i32_1 = arith.constant 0 : i32
    return %c0_i32, %c0_i32_0 : i32, i32
  }
  func.func @transform_4(%arg0: i32) -> (i32, i32) {
    %c0_i32 = arith.constant 0 : i32
    %c0_i32_0 = arith.constant 0 : i32
    %c0_i32_1 = arith.constant 0 : i32
    return %c0_i32, %c0_i32_0 : i32, i32
  }
  func.func @transform_5(%arg0: i32) -> (i32, i32) {
    %c0_i32 = arith.constant 0 : i32
    %c0_i32_0 = arith.constant 0 : i32
    return %arg0, %c0_i32 : i32, i32
  }
}

</mosaic_0001>

<llo_original>
// kernel: hooked_module_forward.1
$region0: #{hooked_module_forward.1}
  #allocation0 [shape = 'u32[]', space=smem, size = 0x4, offset = 0x4, fixed_abs, tag = 'smem constant byte address 0x4 - core index']
  #allocation1 [shape = 'u32[72,128]{1,0:T(1,128)}', space=vmem, size = 0x9000, scoped, tag = 'internal scratch']
  %s0 = inlined_call_operand.vmem [shape: f32[1024,32], index: 0, kind: input, shape index: {}]
  %s1 = inlined_call_operand.vmem [shape: f32[32,128], index: 1, kind: input, shape index: {}]
  %s2 = inlined_call_operand.vmem [shape: f32[1,128], index: 2, kind: input, shape index: {}]
  %s3 = inlined_call_operand.vmem [shape: f32[128,16], index: 3, kind: input, shape index: {}]
  %s4 = inlined_call_operand.vmem [shape: f32[1,16], index: 4, kind: input, shape index: {}]
  %s5 = inlined_call_operand.vmem [shape: f32[1024,16], index: 5, kind: output, shape index: {}]
  %s6 = sld [smem:[#allocation0]]
  $region53: #{hooked_module_forward.1} parent=0
    _
  %s8 = ssub.s32 1, %s6
  %s9 = scalar_select 0, %s8, %s6
  loop: start=0, step=1, limit=4
  $region2: #{hooked_module_forward.1} parent=0 // loop_pre_header
    _
  $region3: #{hooked_module_forward.1} parent=0 // loop_header
    %s11 = sphi 0, %s15
    %p12 = scmp.ge.s32.totalorder %s11, 4
    %s21 = sphi 0, %s23
    %s24 = sphi 0, %s21
    %s25 = sphi 0, %s24
    %s41 = sphi 0, %s25
    %s45 = sphi 0, %s45
    %s47 = sphi 0, %s45
    %s48 = sphi 0, %s47
    %s62 = sphi 0, %s48
    %s66 = sphi 0, %s66
    %s68 = sphi 0, %s66
    %s69 = sphi 0, %s68
    %s83 = sphi 0, %s69
    %s87 = sphi 0, %s87
    %s89 = sphi 0, %s87
    %s90 = sphi 0, %s89
    %s104 = sphi 0, %s90
    %s108 = sphi 0, %s108
    %s110 = sphi 0, %s108
    %s111 = sphi 0, %s110
    %s125 = sphi 0, %s111
    %s131 = sphi 0, %s133
    %s134 = sphi 0, %s131
    %s135 = sphi 0, %s134
    %s151 = sphi 0, %s135
  $region4: #{hooked_module_forward.1} parent=0 // loop_header_branch
    %14 = sbr.rel (%p12) target = $region8
  $region5: #{hooked_module_forward.1} parent=0 // loop_body
    %s16 = ssub.s32 %s11, 1
    %s17 = ssub.s32 %s11, 2
    %s18 = sadd.s32 %s11, 1
    %s19 = ssub.s32 %s11, %s18
    %p20 = scmp.eq.s32.totalorder %s19, 0
    %s22 = sadd.s32 %s21, 1
    %s23 = scalar_select %p20, %s21, %s22
    %p26 = pneg %p20
    %p27 = scmp.eq.s32.totalorder %s11, 1
    %p28 = por %p26, %p27
    %p29 = scmp.ne.s32.totalorder %s21, %s24
    %p30 = scmp.eq.s32.totalorder %s11, 0
    %p31 = por %p29, %p30
    %p32 = scmp.ne.s32.totalorder %s21, %s24
    %p33 = scmp.eq.s32.totalorder %s16, 1
    %p34 = por %p32, %p33
    %p35 = scmp.ne.s32.totalorder %s24, %s25
    %p36 = scmp.eq.s32.totalorder %s16, 0
    %p37 = por %p35, %p36
    %p38 = scmp.ne.s32.totalorder %s24, %s25
    %p39 = scmp.eq.s32.totalorder %s17, 1
    %p40 = por %p38, %p39
    %p42 = scmp.ne.s32.totalorder %s25, %s41
    %p43 = scmp.eq.s32.totalorder %s17, 0
    %p44 = por %p42, %p43
    %s46 = sadd.s32 %s45, 1
    %p49 = scmp.eq.s32.totalorder %s11, 1
    %p50 = scmp.ne.s32.totalorder %s45, %s47
    %p51 = scmp.eq.s32.totalorder %s11, 0
    %p52 = por %p50, %p51
    %p53 = scmp.ne.s32.totalorder %s45, %s47
    %p54 = scmp.eq.s32.totalorder %s16, 1
    %p55 = por %p53, %p54
    %p56 = scmp.ne.s32.totalorder %s47, %s48
    %p57 = scmp.eq.s32.totalorder %s16, 0
    %p58 = por %p56, %p57
    %p59 = scmp.ne.s32.totalorder %s47, %s48
    %p60 = scmp.eq.s32.totalorder %s17, 1
    %p61 = por %p59, %p60
    %p63 = scmp.ne.s32.totalorder %s48, %s62
    %p64 = scmp.eq.s32.totalorder %s17, 0
    %p65 = por %p63, %p64
    %s67 = sadd.s32 %s66, 1
    %p70 = scmp.eq.s32.totalorder %s11, 1
    %p71 = scmp.ne.s32.totalorder %s66, %s68
    %p72 = scmp.eq.s32.totalorder %s11, 0
    %p73 = por %p71, %p72
    %p74 = scmp.ne.s32.totalorder %s66, %s68
    %p75 = scmp.eq.s32.totalorder %s16, 1
    %p76 = por %p74, %p75
    %p77 = scmp.ne.s32.totalorder %s68, %s69
    %p78 = scmp.eq.s32.totalorder %s16, 0
    %p79 = por %p77, %p78
    %p80 = scmp.ne.s32.totalorder %s68, %s69
    %p81 = scmp.eq.s32.totalorder %s17, 1
    %p82 = por %p80, %p81
    %p84 = scmp.ne.s32.totalorder %s69, %s83
    %p85 = scmp.eq.s32.totalorder %s17, 0
    %p86 = por %p84, %p85
    %s88 = sadd.s32 %s87, 1
    %p91 = scmp.eq.s32.totalorder %s11, 1
    %p92 = scmp.ne.s32.totalorder %s87, %s89
    %p93 = scmp.eq.s32.totalorder %s11, 0
    %p94 = por %p92, %p93
    %p95 = scmp.ne.s32.totalorder %s87, %s89
    %p96 = scmp.eq.s32.totalorder %s16, 1
    %p97 = por %p95, %p96
    %p98 = scmp.ne.s32.totalorder %s89, %s90
    %p99 = scmp.eq.s32.totalorder %s16, 0
    %p100 = por %p98, %p99
    %p101 = scmp.ne.s32.totalorder %s89, %s90
    %p102 = scmp.eq.s32.totalorder %s17, 1
    %p103 = por %p101, %p102
    %p105 = scmp.ne.s32.totalorder %s90, %s104
    %p106 = scmp.eq.s32.totalorder %s17, 0
    %p107 = por %p105, %p106
    %s109 = sadd.s32 %s108, 1
    %p112 = scmp.eq.s32.totalorder %s11, 1
    %p113 = scmp.ne.s32.totalorder %s108, %s110
    %p114 = scmp.eq.s32.totalorder %s11, 0
    %p115 = por %p113, %p114
    %p116 = scmp.ne.s32.totalorder %s108, %s110
    %p117 = scmp.eq.s32.totalorder %s16, 1
    %p118 = por %p116, %p117
    %p119 = scmp.ne.s32.totalorder %s110, %s111
    %p120 = scmp.eq.s32.totalorder %s16, 0
    %p121 = por %p119, %p120
    %p122 = scmp.ne.s32.totalorder %s110, %s111
    %p123 = scmp.eq.s32.totalorder %s17, 1
    %p124 = por %p122, %p123
    %p126 = scmp.ne.s32.totalorder %s111, %s125
    %p127 = scmp.eq.s32.totalorder %s17, 0
    %p128 = por %p126, %p127
    %s129 = ssub.s32 %s11, %s18
    %p130 = scmp.eq.s32.totalorder %s129, 0
    %s132 = sadd.s32 %s131, 1
    %s133 = scalar_select %p130, %s131, %s132
    %p136 = pneg %p130
    %p137 = scmp.eq.s32.totalorder %s11, 1
    %p138 = por %p136, %p137
    %p139 = scmp.ne.s32.totalorder %s131, %s134
    %p140 = scmp.eq.s32.totalorder %s11, 0
    %p141 = por %p139, %p140
    %p142 = scmp.ne.s32.totalorder %s131, %s134
    %p143 = scmp.eq.s32.totalorder %s16, 1
    %p144 = por %p142, %p143
    %p145 = scmp.ne.s32.totalorder %s134, %s135
    %p146 = scmp.eq.s32.totalorder %s16, 0
    %p147 = por %p145, %p146
    %p148 = scmp.ne.s32.totalorder %s134, %s135
    %p149 = scmp.eq.s32.totalorder %s17, 1
    %p150 = por %p148, %p149
    %p152 = scmp.ne.s32.totalorder %s135, %s151
    %p153 = scmp.eq.s32.totalorder %s17, 0
    %p154 = por %p152, %p153
    %p155 = scmp.le.s32.totalorder 1, %s11
    %p156 = scmp.lt.s32.totalorder %s11, 3
    %p157 = pnand %p155, %p156
    %p158 = pneg %p157
    // Predicated region
    $region9: #{hooked_module_forward.1} parent=5 // pred_check
      _
    $region10: #{hooked_module_forward.1} parent=5 // pred_check_branch
      %160 = sbr.rel (%p157) target = $region12
    $region11: #{hooked_module_forward.1} parent=5 // pred_region
      %s161 = ssub.s32 %s11, 1
      // Predicated region
      $region13: #{hooked_module_forward.1} parent=11 // pred_check
        %p162 = pneg %p58
      $region14: #{hooked_module_forward.1} parent=11 // pred_check_branch
        %164 = sbr.rel (%p162) target = $region16
      $region15: #{hooked_module_forward.1} parent=11 // pred_region
        _
      $region16: #{hooked_module_forward.1} parent=11 // pred_fallthru
        _
      // Predicated region
      $region17: #{hooked_module_forward.1} parent=11 // pred_check
        %p165 = pneg %p79
      $region18: #{hooked_module_forward.1} parent=11 // pred_check_branch
        %167 = sbr.rel (%p165) target = $region20
      $region19: #{hooked_module_forward.1} parent=11 // pred_region
        _
      $region20: #{hooked_module_forward.1} parent=11 // pred_fallthru
        _
      // Predicated region
      $region21: #{hooked_module_forward.1} parent=11 // pred_check
        %p168 = pneg %p100
      $region22: #{hooked_module_forward.1} parent=11 // pred_check_branch
        %170 = sbr.rel (%p168) target = $region24
      $region23: #{hooked_module_forward.1} parent=11 // pred_region
        _
      $region24: #{hooked_module_forward.1} parent=11 // pred_fallthru
        _
      // Predicated region
      $region25: #{hooked_module_forward.1} parent=11 // pred_check
        %p171 = pneg %p121
      $region26: #{hooked_module_forward.1} parent=11 // pred_check_branch
        %173 = sbr.rel (%p171) target = $region28
      $region27: #{hooked_module_forward.1} parent=11 // pred_region
        _
      $region28: #{hooked_module_forward.1} parent=11 // pred_fallthru
        _
    $region12: #{hooked_module_forward.1} parent=5 // pred_fallthru
      _
    %p174 = scmp.lt.s32.totalorder %s11, 2
    // Predicated region
    $region29: #{hooked_module_forward.1} parent=5 // pred_check
      %p175 = pneg %p174
    $region30: #{hooked_module_forward.1} parent=5 // pred_check_branch
      %177 = sbr.rel (%p175) target = $region32
    $region31: #{hooked_module_forward.1} parent=5 // pred_region
      // Predicated region
      $region33: #{hooked_module_forward.1} parent=31 // pred_check
        %p178 = pneg %p31
      $region34: #{hooked_module_forward.1} parent=31 // pred_check_branch
        %180 = sbr.rel (%p178) target = $region36
      $region35: #{hooked_module_forward.1} parent=31 // pred_region
        %s181 = smul.u32 64, %s11
        %p182 = scmp.lt.s32.totalorder %s181, 127
        %s183 = scalar_select %p182, %s181, 127
        %s184 = smul.addr %s183, 8
        %s185 = scalar_lea.vmem %s0, %s184
        %s186 = smul.u32 64, %s11
      $region36: #{hooked_module_forward.1} parent=31 // pred_fallthru
        _
    $region32: #{hooked_module_forward.1} parent=5 // pred_fallthru
      _
    %p187 = scmp.le.s32.totalorder 1, %s11
    %p188 = scmp.lt.s32.totalorder %s11, 3
    %p189 = pnand %p187, %p188
    %p190 = pneg %p189
    // Predicated region
    $region37: #{hooked_module_forward.1} parent=5 // pred_check
      _
    $region38: #{hooked_module_forward.1} parent=5 // pred_check_branch
      %192 = sbr.rel (%p189) target = $region40
    $region39: #{hooked_module_forward.1} parent=5 // pred_region
      %s193 = ssub.s32 %s11, 1
      %s194 = smul.u32 64, %s16
      %p195 = scmp.lt.s32.totalorder %s194, 127
      %s196 = scalar_select %p195, %s194, 127
      %s197 = smul.addr %s196, 8
      %s198 = scalar_lea.vmem %s0, %s197
      %p199 = pneg %p37
      %p200 = pneg %p34
      %p201 = pneg %p58
      %p202 = pneg %p55
      %p203 = pneg %p79
      %p204 = pneg %p76
      %p205 = pneg %p100
      %p206 = pneg %p97
      %p207 = pneg %p121
      %p208 = pneg %p118
      %p209 = pneg %p147
      %p210 = pneg %p144
      %s211 = smul.u32 64, %s16
      %p212 = scmp.lt.s32.totalorder %s211, 127
      %s213 = scalar_select %p212, %s211, 127
      %s214 = smul.addr %s213, 8
      %s215 = scalar_lea.vmem %s5, %s214
      %s216 = smul.u32 64, %s16
      %p217 = scmp.lt.s32.totalorder %s216, 127
      %s218 = scalar_select %p217, %s216, 127
      %s219 = smul.addr %s218, 8
      %s220 = scalar_lea.vmem %s0, %s219
      %s221 = smul.u32 64, %s16
      %s222 = smul.u32 64, %s16
      %p223 = scmp.lt.s32.totalorder %s222, 127
      %s224 = scalar_select %p223, %s222, 127
      %s225 = smul.addr %s224, 8
      %s226 = scalar_lea.vmem %s5, %s225
      %s227 = smul.u32 64, %s16
      %v228 = vld [vmem:[%s220] sm:$0xff]
      %v229 = vld [vmem:[%s220 + $0x8] sm:$0xff]
      %v230 = vld [vmem:[%s220 + $0x10] sm:$0xff]
      %v231 = vld [vmem:[%s220 + $0x18] sm:$0xff]
      %v232 = vld [vmem:[%s220 + $0x20] sm:$0xff]
      %v233 = vld [vmem:[%s220 + $0x28] sm:$0xff]
      %v234 = vld [vmem:[%s220 + $0x30] sm:$0xff]
      %v235 = vld [vmem:[%s220 + $0x38] sm:$0xff]
      %v236 = vld [vmem:[%s220 + $0x40] sm:$0xff]
      %v237 = vld [vmem:[%s220 + $0x48] sm:$0xff]
      %v238 = vld [vmem:[%s220 + $0x50] sm:$0xff]
      %v239 = vld [vmem:[%s220 + $0x58] sm:$0xff]
      %v240 = vld [vmem:[%s220 + $0x60] sm:$0xff]
      %v241 = vld [vmem:[%s220 + $0x68] sm:$0xff]
      %v242 = vld [vmem:[%s220 + $0x70] sm:$0xff]
      %v243 = vld [vmem:[%s220 + $0x78] sm:$0xff]
      %v244 = vld [vmem:[%s220 + $0x80] sm:$0xff]
      %v245 = vld [vmem:[%s220 + $0x88] sm:$0xff]
      %v246 = vld [vmem:[%s220 + $0x90] sm:$0xff]
      %v247 = vld [vmem:[%s220 + $0x98] sm:$0xff]
      %v248 = vld [vmem:[%s220 + $0xa0] sm:$0xff]
      %v249 = vld [vmem:[%s220 + $0xa8] sm:$0xff]
      %v250 = vld [vmem:[%s220 + $0xb0] sm:$0xff]
      %v251 = vld [vmem:[%s220 + $0xb8] sm:$0xff]
      %v252 = vld [vmem:[%s220 + $0xc0] sm:$0xff]
      %v253 = vld [vmem:[%s220 + $0xc8] sm:$0xff]
      %v254 = vld [vmem:[%s220 + $0xd0] sm:$0xff]
      %v255 = vld [vmem:[%s220 + $0xd8] sm:$0xff]
      %v256 = vld [vmem:[%s220 + $0xe0] sm:$0xff]
      %v257 = vld [vmem:[%s220 + $0xe8] sm:$0xff]
      %v258 = vld [vmem:[%s220 + $0xf0] sm:$0xff]
      %v259 = vld [vmem:[%s220 + $0xf8] sm:$0xff]
      %v260 = vld [vmem:[%s220 + $0x100] sm:$0xff]
      %v261 = vld [vmem:[%s220 + $0x108] sm:$0xff]
      %v262 = vld [vmem:[%s220 + $0x110] sm:$0xff]
      %v263 = vld [vmem:[%s220 + $0x118] sm:$0xff]
      %v264 = vld [vmem:[%s220 + $0x120] sm:$0xff]
      %v265 = vld [vmem:[%s220 + $0x128] sm:$0xff]
      %v266 = vld [vmem:[%s220 + $0x130] sm:$0xff]
      %v267 = vld [vmem:[%s220 + $0x138] sm:$0xff]
      %v268 = vld [vmem:[%s220 + $0x140] sm:$0xff]
      %v269 = vld [vmem:[%s220 + $0x148] sm:$0xff]
      %v270 = vld [vmem:[%s220 + $0x150] sm:$0xff]
      %v271 = vld [vmem:[%s220 + $0x158] sm:$0xff]
      %v272 = vld [vmem:[%s220 + $0x160] sm:$0xff]
      %v273 = vld [vmem:[%s220 + $0x168] sm:$0xff]
      %v274 = vld [vmem:[%s220 + $0x170] sm:$0xff]
      %v275 = vld [vmem:[%s220 + $0x178] sm:$0xff]
      %v276 = vld [vmem:[%s220 + $0x180] sm:$0xff]
      %v277 = vld [vmem:[%s220 + $0x188] sm:$0xff]
      %v278 = vld [vmem:[%s220 + $0x190] sm:$0xff]
      %v279 = vld [vmem:[%s220 + $0x198] sm:$0xff]
      %v280 = vld [vmem:[%s220 + $0x1a0] sm:$0xff]
      %v281 = vld [vmem:[%s220 + $0x1a8] sm:$0xff]
      %v282 = vld [vmem:[%s220 + $0x1b0] sm:$0xff]
      %v283 = vld [vmem:[%s220 + $0x1b8] sm:$0xff]
      %v284 = vld [vmem:[%s220 + $0x1c0] sm:$0xff]
      %v285 = vld [vmem:[%s220 + $0x1c8] sm:$0xff]
      %v286 = vld [vmem:[%s220 + $0x1d0] sm:$0xff]
      %v287 = vld [vmem:[%s220 + $0x1d8] sm:$0xff]
      %v288 = vld [vmem:[%s220 + $0x1e0] sm:$0xff]
      %v289 = vld [vmem:[%s220 + $0x1e8] sm:$0xff]
      %v290 = vld [vmem:[%s220 + $0x1f0] sm:$0xff]
      %v291 = vld [vmem:[%s220 + $0x1f8] sm:$0xff]
      %v292 = vld [vmem:[%s1] sm:$0xff]
      %v293 = vld [vmem:[%s1 + $0x8] sm:$0xff]
      %v294 = vld [vmem:[%s1 + $0x10] sm:$0xff]
      %v295 = vld [vmem:[%s1 + $0x18] sm:$0xff]
      %v296 = vld [vmem:[%s2] sm:$0x1]
      %v298 = vperm.slane %v296, 0
      %vm300 = vcmask 261120
      %v302 = vsel %vm300, %v228, 0
      %v305 = vsel %vm300, %v229, 0
      %v308 = vsel %vm300, %v230, 0
      %v311 = vsel %vm300, %v231, 0
      %v314 = vsel %vm300, %v232, 0
      %v317 = vsel %vm300, %v233, 0
      %v320 = vsel %vm300, %v234, 0
      %v323 = vsel %vm300, %v235, 0
      %v326 = vsel %vm300, %v236, 0
      %v329 = vsel %vm300, %v237, 0
      %v332 = vsel %vm300, %v238, 0
      %v335 = vsel %vm300, %v239, 0
      %v338 = vsel %vm300, %v240, 0
      %v341 = vsel %vm300, %v241, 0
      %v344 = vsel %vm300, %v242, 0
      %v347 = vsel %vm300, %v243, 0
      %v350 = vsel %vm300, %v244, 0
      %v353 = vsel %vm300, %v245, 0
      %v356 = vsel %vm300, %v246, 0
      %v359 = vsel %vm300, %v247, 0
      %v362 = vsel %vm300, %v248, 0
      %v365 = vsel %vm300, %v249, 0
      %v368 = vsel %vm300, %v250, 0
      %v371 = vsel %vm300, %v251, 0
      %v374 = vsel %vm300, %v252, 0
      %v377 = vsel %vm300, %v253, 0
      %v380 = vsel %vm300, %v254, 0
      %v383 = vsel %vm300, %v255, 0
      %v386 = vsel %vm300, %v256, 0
      %v389 = vsel %vm300, %v257, 0
      %v392 = vsel %vm300, %v258, 0
      %v395 = vsel %vm300, %v259, 0
      %v398 = vsel %vm300, %v260, 0
      %v401 = vsel %vm300, %v261, 0
      %v404 = vsel %vm300, %v262, 0
      %v407 = vsel %vm300, %v263, 0
      %v410 = vsel %vm300, %v264, 0
      %v413 = vsel %vm300, %v265, 0
      %v416 = vsel %vm300, %v266, 0
      %v419 = vsel %vm300, %v267, 0
      %v422 = vsel %vm300, %v268, 0
      %v425 = vsel %vm300, %v269, 0
      %v428 = vsel %vm300, %v270, 0
      %v431 = vsel %vm300, %v271, 0
      %v434 = vsel %vm300, %v272, 0
      %v437 = vsel %vm300, %v273, 0
      %v440 = vsel %vm300, %v274, 0
      %v443 = vsel %vm300, %v275, 0
      %v446 = vsel %vm300, %v276, 0
      %v449 = vsel %vm300, %v277, 0
      %v452 = vsel %vm300, %v278, 0
      %v455 = vsel %vm300, %v279, 0
      %v458 = vsel %vm300, %v280, 0
      %v461 = vsel %vm300, %v281, 0
      %v464 = vsel %vm300, %v282, 0
      %v467 = vsel %vm300, %v283, 0
      %v470 = vsel %vm300, %v284, 0
      %v473 = vsel %vm300, %v285, 0
      %v476 = vsel %vm300, %v286, 0
      %v479 = vsel %vm300, %v287, 0
      %v482 = vsel %vm300, %v288, 0
      %v485 = vsel %vm300, %v289, 0
      %v488 = vsel %vm300, %v290, 0
      %v491 = vsel %vm300, %v291, 0
      %493 = vmatpush.msra.mxu0 0.0
      %494 = vmatpush.msra.mxu0 0.0
      %495 = vmatpush.msra.mxu0 0.0
      %496 = vmatpush.msra.mxu0 0.0
      %497 = vmatpush.msra.mxu0 0.0
      %498 = vmatpush.msra.mxu0 0.0
      %499 = vmatpush.msra.mxu0 0.0
      %500 = vmatpush.msra.mxu0 0.0
      %501 = vmatpush.msra.mxu0 0.0
      %502 = vmatpush.msra.mxu0 0.0
      %503 = vmatpush.msra.mxu0 0.0
      %504 = vmatpush.msra.mxu0 0.0
      %505 = vmatpush.msra.mxu0 %v295
      %506 = vmatpush.msra.mxu0 %v294
      %507 = vmatpush.msra.mxu0 %v293
      %508 = vmatpush.msra.mxu0 %v292
      %509 = vmatmul.f32.gmra.mxu0 %v302
      %v510 = vpop.f32.mrf.mxu0
      %v511 = vadd.f32 %v298, %v510
      %512 = vmatmul.f32.gmra.mxu0 %v305
      %v513 = vpop.f32.mrf.mxu0
      %v514 = vadd.f32 %v298, %v513
      %515 = vmatmul.f32.gmra.mxu0 %v308
      %v516 = vpop.f32.mrf.mxu0
      %v517 = vadd.f32 %v298, %v516
      %518 = vmatmul.f32.gmra.mxu0 %v311
      %v519 = vpop.f32.mrf.mxu0
      %v520 = vadd.f32 %v298, %v519
      %521 = vmatmul.f32.gmra.mxu0 %v314
      %v522 = vpop.f32.mrf.mxu0
      %v523 = vadd.f32 %v298, %v522
      %524 = vmatmul.f32.gmra.mxu0 %v317
      %v525 = vpop.f32.mrf.mxu0
      %v526 = vadd.f32 %v298, %v525
      %527 = vmatmul.f32.gmra.mxu0 %v320
      %v528 = vpop.f32.mrf.mxu0
      %v529 = vadd.f32 %v298, %v528
      %530 = vmatmul.f32.gmra.mxu0 %v323
      %v531 = vpop.f32.mrf.mxu0
      %v532 = vadd.f32 %v298, %v531
      %533 = vmatmul.f32.gmra.mxu0 %v326
      %v534 = vpop.f32.mrf.mxu0
      %v535 = vadd.f32 %v298, %v534
      %536 = vmatmul.f32.gmra.mxu0 %v329
      %v537 = vpop.f32.mrf.mxu0
      %v538 = vadd.f32 %v298, %v537
      %539 = vmatmul.f32.gmra.mxu0 %v332
      %v540 = vpop.f32.mrf.mxu0
      %v541 = vadd.f32 %v298, %v540
      %542 = vmatmul.f32.gmra.mxu0 %v335
      %v543 = vpop.f32.mrf.mxu0
      %v544 = vadd.f32 %v298, %v543
      %545 = vmatmul.f32.gmra.mxu0 %v338
      %v546 = vpop.f32.mrf.mxu0
      %v547 = vadd.f32 %v298, %v546
      %548 = vmatmul.f32.gmra.mxu0 %v341
      %v549 = vpop.f32.mrf.mxu0
      %v550 = vadd.f32 %v298, %v549
      %551 = vmatmul.f32.gmra.mxu0 %v344
      %v552 = vpop.f32.mrf.mxu0
      %v553 = vadd.f32 %v298, %v552
      %554 = vmatmul.f32.gmra.mxu0 %v347
      %v555 = vpop.f32.mrf.mxu0
      %v556 = vadd.f32 %v298, %v555
      %557 = vmatmul.f32.gmra.mxu0 %v350
      %v558 = vpop.f32.mrf.mxu0
      %v559 = vadd.f32 %v298, %v558
      %560 = vmatmul.f32.gmra.mxu0 %v353
      %v561 = vpop.f32.mrf.mxu0
      %v562 = vadd.f32 %v298, %v561
      %563 = vmatmul.f32.gmra.mxu0 %v356
      %v564 = vpop.f32.mrf.mxu0
      %v565 = vadd.f32 %v298, %v564
      %566 = vmatmul.f32.gmra.mxu0 %v359
      %v567 = vpop.f32.mrf.mxu0
      %v568 = vadd.f32 %v298, %v567
      %569 = vmatmul.f32.gmra.mxu0 %v362
      %v570 = vpop.f32.mrf.mxu0
      %v571 = vadd.f32 %v298, %v570
      %572 = vmatmul.f32.gmra.mxu0 %v365
      %v573 = vpop.f32.mrf.mxu0
      %v574 = vadd.f32 %v298, %v573
      %575 = vmatmul.f32.gmra.mxu0 %v368
      %v576 = vpop.f32.mrf.mxu0
      %v577 = vadd.f32 %v298, %v576
      %578 = vmatmul.f32.gmra.mxu0 %v371
      %v579 = vpop.f32.mrf.mxu0
      %v580 = vadd.f32 %v298, %v579
      %581 = vmatmul.f32.gmra.mxu0 %v374
      %v582 = vpop.f32.mrf.mxu0
      %v583 = vadd.f32 %v298, %v582
      %584 = vmatmul.f32.gmra.mxu0 %v377
      %v585 = vpop.f32.mrf.mxu0
      %v586 = vadd.f32 %v298, %v585
      %587 = vmatmul.f32.gmra.mxu0 %v380
      %v588 = vpop.f32.mrf.mxu0
      %v589 = vadd.f32 %v298, %v588
      %590 = vmatmul.f32.gmra.mxu0 %v383
      %v591 = vpop.f32.mrf.mxu0
      %v592 = vadd.f32 %v298, %v591
      %593 = vmatmul.f32.gmra.mxu0 %v386
      %v594 = vpop.f32.mrf.mxu0
      %v595 = vadd.f32 %v298, %v594
      %596 = vmatmul.f32.gmra.mxu0 %v389
      %v597 = vpop.f32.mrf.mxu0
      %v598 = vadd.f32 %v298, %v597
      %599 = vmatmul.f32.gmra.mxu0 %v392
      %v600 = vpop.f32.mrf.mxu0
      %v601 = vadd.f32 %v298, %v600
      %602 = vmatmul.f32.gmra.mxu0 %v395
      %v603 = vpop.f32.mrf.mxu0
      %v604 = vadd.f32 %v298, %v603
      %605 = vmatmul.f32.gmra.mxu0 %v398
      %v606 = vpop.f32.mrf.mxu0
      %v607 = vadd.f32 %v298, %v606
      %608 = vmatmul.f32.gmra.mxu0 %v401
      %v609 = vpop.f32.mrf.mxu0
      %v610 = vadd.f32 %v298, %v609
      %611 = vmatmul.f32.gmra.mxu0 %v404
      %v612 = vpop.f32.mrf.mxu0
      %v613 = vadd.f32 %v298, %v612
      %614 = vmatmul.f32.gmra.mxu0 %v407
      %v615 = vpop.f32.mrf.mxu0
      %v616 = vadd.f32 %v298, %v615
      %617 = vmatmul.f32.gmra.mxu0 %v410
      %v618 = vpop.f32.mrf.mxu0
      %v619 = vadd.f32 %v298, %v618
      %620 = vmatmul.f32.gmra.mxu0 %v413
      %v621 = vpop.f32.mrf.mxu0
      %v622 = vadd.f32 %v298, %v621
      %623 = vmatmul.f32.gmra.mxu0 %v416
      %v624 = vpop.f32.mrf.mxu0
      %v625 = vadd.f32 %v298, %v624
      %626 = vmatmul.f32.gmra.mxu0 %v419
      %v627 = vpop.f32.mrf.mxu0
      %v628 = vadd.f32 %v298, %v627
      %629 = vmatmul.f32.gmra.mxu0 %v422
      %v630 = vpop.f32.mrf.mxu0
      %v631 = vadd.f32 %v298, %v630
      %632 = vmatmul.f32.gmra.mxu0 %v425
      %v633 = vpop.f32.mrf.mxu0
      %v634 = vadd.f32 %v298, %v633
      %635 = vmatmul.f32.gmra.mxu0 %v428
      %v636 = vpop.f32.mrf.mxu0
      %v637 = vadd.f32 %v298, %v636
      %638 = vmatmul.f32.gmra.mxu0 %v431
      %v639 = vpop.f32.mrf.mxu0
      %v640 = vadd.f32 %v298, %v639
      %641 = vmatmul.f32.gmra.mxu0 %v434
      %v642 = vpop.f32.mrf.mxu0
      %v643 = vadd.f32 %v298, %v642
      %644 = vmatmul.f32.gmra.mxu0 %v437
      %v645 = vpop.f32.mrf.mxu0
      %v646 = vadd.f32 %v298, %v645
      %647 = vmatmul.f32.gmra.mxu0 %v440
      %v648 = vpop.f32.mrf.mxu0
      %v649 = vadd.f32 %v298, %v648
      %650 = vmatmul.f32.gmra.mxu0 %v443
      %v651 = vpop.f32.mrf.mxu0
      %v652 = vadd.f32 %v298, %v651
      %653 = vmatmul.f32.gmra.mxu0 %v446
      %v654 = vpop.f32.mrf.mxu0
      %v655 = vadd.f32 %v298, %v654
      %656 = vmatmul.f32.gmra.mxu0 %v449
      %v657 = vpop.f32.mrf.mxu0
      %v658 = vadd.f32 %v298, %v657
      %659 = vmatmul.f32.gmra.mxu0 %v452
      %v660 = vpop.f32.mrf.mxu0
      %v661 = vadd.f32 %v298, %v660
      %662 = vmatmul.f32.gmra.mxu0 %v455
      %v663 = vpop.f32.mrf.mxu0
      %v664 = vadd.f32 %v298, %v663
      %665 = vmatmul.f32.gmra.mxu0 %v458
      %v666 = vpop.f32.mrf.mxu0
      %v667 = vadd.f32 %v298, %v666
      %668 = vmatmul.f32.gmra.mxu0 %v461
      %v669 = vpop.f32.mrf.mxu0
      %v670 = vadd.f32 %v298, %v669
      %671 = vmatmul.f32.gmra.mxu0 %v464
      %v672 = vpop.f32.mrf.mxu0
      %v673 = vadd.f32 %v298, %v672
      %674 = vmatmul.f32.gmra.mxu0 %v467
      %v675 = vpop.f32.mrf.mxu0
      %v676 = vadd.f32 %v298, %v675
      %677 = vmatmul.f32.gmra.mxu0 %v470
      %v678 = vpop.f32.mrf.mxu0
      %v679 = vadd.f32 %v298, %v678
      %680 = vmatmul.f32.gmra.mxu0 %v473
      %v681 = vpop.f32.mrf.mxu0
      %v682 = vadd.f32 %v298, %v681
      %683 = vmatmul.f32.gmra.mxu0 %v476
      %v684 = vpop.f32.mrf.mxu0
      %v685 = vadd.f32 %v298, %v684
      %686 = vmatmul.f32.gmra.mxu0 %v479
      %v687 = vpop.f32.mrf.mxu0
      %v688 = vadd.f32 %v298, %v687
      %689 = vmatmul.f32.gmra.mxu0 %v482
      %v690 = vpop.f32.mrf.mxu0
      %v691 = vadd.f32 %v298, %v690
      %692 = vmatmul.f32.gmra.mxu0 %v485
      %v693 = vpop.f32.mrf.mxu0
      %v694 = vadd.f32 %v298, %v693
      %695 = vmatmul.f32.gmra.mxu0 %v488
      %v696 = vpop.f32.mrf.mxu0
      %v697 = vadd.f32 %v298, %v696
      %698 = vmatmul.f32.gmra.mxu0 %v491
      %v699 = vpop.f32.mrf.mxu0
      %v700 = vadd.f32 %v298, %v699
      %701 = vdwg.mxu0
      %v702 = vmax.f32 %v511, 0.0
      %v703 = vmax.f32 %v514, 0.0
      %v704 = vmax.f32 %v517, 0.0
      %v705 = vmax.f32 %v520, 0.0
      %v706 = vmax.f32 %v523, 0.0
      %v707 = vmax.f32 %v526, 0.0
      %v708 = vmax.f32 %v529, 0.0
      %v709 = vmax.f32 %v532, 0.0
      %v710 = vmax.f32 %v535, 0.0
      %v711 = vmax.f32 %v538, 0.0
      %v712 = vmax.f32 %v541, 0.0
      %v713 = vmax.f32 %v544, 0.0
      %v714 = vmax.f32 %v547, 0.0
      %v715 = vmax.f32 %v550, 0.0
      %v716 = vmax.f32 %v553, 0.0
      %v717 = vmax.f32 %v556, 0.0
      %v718 = vmax.f32 %v559, 0.0
      %v719 = vmax.f32 %v562, 0.0
      %v720 = vmax.f32 %v565, 0.0
      %v721 = vmax.f32 %v568, 0.0
      %v722 = vmax.f32 %v571, 0.0
      %v723 = vmax.f32 %v574, 0.0
      %v724 = vmax.f32 %v577, 0.0
      %v725 = vmax.f32 %v580, 0.0
      %v726 = vmax.f32 %v583, 0.0
      %v727 = vmax.f32 %v586, 0.0
      %v728 = vmax.f32 %v589, 0.0
      %v729 = vmax.f32 %v592, 0.0
      %v730 = vmax.f32 %v595, 0.0
      %v731 = vmax.f32 %v598, 0.0
      %v732 = vmax.f32 %v601, 0.0
      %v733 = vmax.f32 %v604, 0.0
      %v734 = vmax.f32 %v607, 0.0
      %v735 = vmax.f32 %v610, 0.0
      %v736 = vmax.f32 %v613, 0.0
      %v737 = vmax.f32 %v616, 0.0
      %v738 = vmax.f32 %v619, 0.0
      %v739 = vmax.f32 %v622, 0.0
      %v740 = vmax.f32 %v625, 0.0
      %v741 = vmax.f32 %v628, 0.0
      %v742 = vmax.f32 %v631, 0.0
      %v743 = vmax.f32 %v634, 0.0
      %v744 = vmax.f32 %v637, 0.0
      %v745 = vmax.f32 %v640, 0.0
      %v746 = vmax.f32 %v643, 0.0
      %v747 = vmax.f32 %v646, 0.0
      %v748 = vmax.f32 %v649, 0.0
      %v749 = vmax.f32 %v652, 0.0
      %v750 = vmax.f32 %v655, 0.0
      %v751 = vmax.f32 %v658, 0.0
      %v752 = vmax.f32 %v661, 0.0
      %v753 = vmax.f32 %v664, 0.0
      %v754 = vmax.f32 %v667, 0.0
      %v755 = vmax.f32 %v670, 0.0
      %v756 = vmax.f32 %v673, 0.0
      %v757 = vmax.f32 %v676, 0.0
      %v758 = vmax.f32 %v679, 0.0
      %v759 = vmax.f32 %v682, 0.0
      %v760 = vmax.f32 %v685, 0.0
      %v761 = vmax.f32 %v688, 0.0
      %v762 = vmax.f32 %v691, 0.0
      %v763 = vmax.f32 %v694, 0.0
      %v764 = vmax.f32 %v697, 0.0
      %v765 = vmax.f32 %v700, 0.0
      %v766 = vld [vmem:[%s3] sm:$0xff]
      %v767 = vld [vmem:[%s3 + $0x8] sm:$0xff]
      %v768 = vld [vmem:[%s3 + $0x10] sm:$0xff]
      %v769 = vld [vmem:[%s3 + $0x18] sm:$0xff]
      %v770 = vld [vmem:[%s3 + $0x20] sm:$0xff]
      %v771 = vld [vmem:[%s3 + $0x28] sm:$0xff]
      %v772 = vld [vmem:[%s3 + $0x30] sm:$0xff]
      %v773 = vld [vmem:[%s3 + $0x38] sm:$0xff]
      %v774 = vld [vmem:[%s3 + $0x40] sm:$0xff]
      %v775 = vld [vmem:[%s3 + $0x48] sm:$0xff]
      %v776 = vld [vmem:[%s3 + $0x50] sm:$0xff]
      %v777 = vld [vmem:[%s3 + $0x58] sm:$0xff]
      %v778 = vld [vmem:[%s3 + $0x60] sm:$0xff]
      %v779 = vld [vmem:[%s3 + $0x68] sm:$0xff]
      %v780 = vld [vmem:[%s3 + $0x70] sm:$0xff]
      %v781 = vld [vmem:[%s3 + $0x78] sm:$0xff]
      %v782 = vld [vmem:[%s4] sm:$0x1]
      %v784 = vperm.slane %v782, 0
      %786 = vmatpush.msra.mxu0 %v781
      %787 = vmatpush.msra.mxu0 %v780
      %788 = vmatpush.msra.mxu0 %v779
      %789 = vmatpush.msra.mxu0 %v778
      %790 = vmatpush.msra.mxu0 %v777
      %791 = vmatpush.msra.mxu0 %v776
      %792 = vmatpush.msra.mxu0 %v775
      %793 = vmatpush.msra.mxu0 %v774
      %794 = vmatpush.msra.mxu0 %v773
      %795 = vmatpush.msra.mxu0 %v772
      %796 = vmatpush.msra.mxu0 %v771
      %797 = vmatpush.msra.mxu0 %v770
      %798 = vmatpush.msra.mxu0 %v769
      %799 = vmatpush.msra.mxu0 %v768
      %800 = vmatpush.msra.mxu0 %v767
      %801 = vmatpush.msra.mxu0 %v766
      %802 = vmatmul.f32.gmra.mxu0 %v702
      %v803 = vpop.f32.mrf.mxu0
      %v804 = vadd.f32 %v784, %v803
      %805 = vmatmul.f32.gmra.mxu0 %v703
      %v806 = vpop.f32.mrf.mxu0
      %v807 = vadd.f32 %v784, %v806
      %808 = vmatmul.f32.gmra.mxu0 %v704
      %v809 = vpop.f32.mrf.mxu0
      %v810 = vadd.f32 %v784, %v809
      %811 = vmatmul.f32.gmra.mxu0 %v705
      %v812 = vpop.f32.mrf.mxu0
      %v813 = vadd.f32 %v784, %v812
      %814 = vmatmul.f32.gmra.mxu0 %v706
      %v815 = vpop.f32.mrf.mxu0
      %v816 = vadd.f32 %v784, %v815
      %817 = vmatmul.f32.gmra.mxu0 %v707
      %v818 = vpop.f32.mrf.mxu0
      %v819 = vadd.f32 %v784, %v818
      %820 = vmatmul.f32.gmra.mxu0 %v708
      %v821 = vpop.f32.mrf.mxu0
      %v822 = vadd.f32 %v784, %v821
      %823 = vmatmul.f32.gmra.mxu0 %v709
      %v824 = vpop.f32.mrf.mxu0
      %v825 = vadd.f32 %v784, %v824
      %826 = vmatmul.f32.gmra.mxu0 %v710
      %v827 = vpop.f32.mrf.mxu0
      %v828 = vadd.f32 %v784, %v827
      %829 = vmatmul.f32.gmra.mxu0 %v711
      %v830 = vpop.f32.mrf.mxu0
      %v831 = vadd.f32 %v784, %v830
      %832 = vmatmul.f32.gmra.mxu0 %v712
      %v833 = vpop.f32.mrf.mxu0
      %v834 = vadd.f32 %v784, %v833
      %835 = vmatmul.f32.gmra.mxu0 %v713
      %v836 = vpop.f32.mrf.mxu0
      %v837 = vadd.f32 %v784, %v836
      %838 = vmatmul.f32.gmra.mxu0 %v714
      %v839 = vpop.f32.mrf.mxu0
      %v840 = vadd.f32 %v784, %v839
      %841 = vmatmul.f32.gmra.mxu0 %v715
      %v842 = vpop.f32.mrf.mxu0
      %v843 = vadd.f32 %v784, %v842
      %844 = vmatmul.f32.gmra.mxu0 %v716
      %v845 = vpop.f32.mrf.mxu0
      %v846 = vadd.f32 %v784, %v845
      %847 = vmatmul.f32.gmra.mxu0 %v717
      %v848 = vpop.f32.mrf.mxu0
      %v849 = vadd.f32 %v784, %v848
      %850 = vmatmul.f32.gmra.mxu0 %v718
      %v851 = vpop.f32.mrf.mxu0
      %v852 = vadd.f32 %v784, %v851
      %853 = vmatmul.f32.gmra.mxu0 %v719
      %v854 = vpop.f32.mrf.mxu0
      %v855 = vadd.f32 %v784, %v854
      %856 = vmatmul.f32.gmra.mxu0 %v720
      %v857 = vpop.f32.mrf.mxu0
      %v858 = vadd.f32 %v784, %v857
      %859 = vmatmul.f32.gmra.mxu0 %v721
      %v860 = vpop.f32.mrf.mxu0
      %v861 = vadd.f32 %v784, %v860
      %862 = vmatmul.f32.gmra.mxu0 %v722
      %v863 = vpop.f32.mrf.mxu0
      %v864 = vadd.f32 %v784, %v863
      %865 = vmatmul.f32.gmra.mxu0 %v723
      %v866 = vpop.f32.mrf.mxu0
      %v867 = vadd.f32 %v784, %v866
      %868 = vmatmul.f32.gmra.mxu0 %v724
      %v869 = vpop.f32.mrf.mxu0
      %v870 = vadd.f32 %v784, %v869
      %871 = vmatmul.f32.gmra.mxu0 %v725
      %v872 = vpop.f32.mrf.mxu0
      %v873 = vadd.f32 %v784, %v872
      %874 = vmatmul.f32.gmra.mxu0 %v726
      %v875 = vpop.f32.mrf.mxu0
      %v876 = vadd.f32 %v784, %v875
      %877 = vmatmul.f32.gmra.mxu0 %v727
      %v878 = vpop.f32.mrf.mxu0
      %v879 = vadd.f32 %v784, %v878
      %880 = vmatmul.f32.gmra.mxu0 %v728
      %v881 = vpop.f32.mrf.mxu0
      %v882 = vadd.f32 %v784, %v881
      %883 = vmatmul.f32.gmra.mxu0 %v729
      %v884 = vpop.f32.mrf.mxu0
      %v885 = vadd.f32 %v784, %v884
      %886 = vmatmul.f32.gmra.mxu0 %v730
      %v887 = vpop.f32.mrf.mxu0
      %v888 = vadd.f32 %v784, %v887
      %889 = vmatmul.f32.gmra.mxu0 %v731
      %v890 = vpop.f32.mrf.mxu0
      %v891 = vadd.f32 %v784, %v890
      %892 = vmatmul.f32.gmra.mxu0 %v732
      %v893 = vpop.f32.mrf.mxu0
      %v894 = vadd.f32 %v784, %v893
      %895 = vmatmul.f32.gmra.mxu0 %v733
      %v896 = vpop.f32.mrf.mxu0
      %v897 = vadd.f32 %v784, %v896
      %898 = vmatmul.f32.gmra.mxu0 %v734
      %v899 = vpop.f32.mrf.mxu0
      %v900 = vadd.f32 %v784, %v899
      %901 = vmatmul.f32.gmra.mxu0 %v735
      %v902 = vpop.f32.mrf.mxu0
      %v903 = vadd.f32 %v784, %v902
      %904 = vmatmul.f32.gmra.mxu0 %v736
      %v905 = vpop.f32.mrf.mxu0
      %v906 = vadd.f32 %v784, %v905
      %907 = vmatmul.f32.gmra.mxu0 %v737
      %v908 = vpop.f32.mrf.mxu0
      %v909 = vadd.f32 %v784, %v908
      %910 = vmatmul.f32.gmra.mxu0 %v738
      %v911 = vpop.f32.mrf.mxu0
      %v912 = vadd.f32 %v784, %v911
      %913 = vmatmul.f32.gmra.mxu0 %v739
      %v914 = vpop.f32.mrf.mxu0
      %v915 = vadd.f32 %v784, %v914
      %916 = vmatmul.f32.gmra.mxu0 %v740
      %v917 = vpop.f32.mrf.mxu0
      %v918 = vadd.f32 %v784, %v917
      %919 = vmatmul.f32.gmra.mxu0 %v741
      %v920 = vpop.f32.mrf.mxu0
      %v921 = vadd.f32 %v784, %v920
      %922 = vmatmul.f32.gmra.mxu0 %v742
      %v923 = vpop.f32.mrf.mxu0
      %v924 = vadd.f32 %v784, %v923
      %925 = vmatmul.f32.gmra.mxu0 %v743
      %v926 = vpop.f32.mrf.mxu0
      %v927 = vadd.f32 %v784, %v926
      %928 = vmatmul.f32.gmra.mxu0 %v744
      %v929 = vpop.f32.mrf.mxu0
      %v930 = vadd.f32 %v784, %v929
      %931 = vmatmul.f32.gmra.mxu0 %v745
      %v932 = vpop.f32.mrf.mxu0
      %v933 = vadd.f32 %v784, %v932
      %934 = vmatmul.f32.gmra.mxu0 %v746
      %v935 = vpop.f32.mrf.mxu0
      %v936 = vadd.f32 %v784, %v935
      %937 = vmatmul.f32.gmra.mxu0 %v747
      %v938 = vpop.f32.mrf.mxu0
      %v939 = vadd.f32 %v784, %v938
      %940 = vmatmul.f32.gmra.mxu0 %v748
      %v941 = vpop.f32.mrf.mxu0
      %v942 = vadd.f32 %v784, %v941
      %943 = vmatmul.f32.gmra.mxu0 %v749
      %v944 = vpop.f32.mrf.mxu0
      %v945 = vadd.f32 %v784, %v944
      %946 = vmatmul.f32.gmra.mxu0 %v750
      %v947 = vpop.f32.mrf.mxu0
      %v948 = vadd.f32 %v784, %v947
      %949 = vmatmul.f32.gmra.mxu0 %v751
      %v950 = vpop.f32.mrf.mxu0
      %v951 = vadd.f32 %v784, %v950
      %952 = vmatmul.f32.gmra.mxu0 %v752
      %v953 = vpop.f32.mrf.mxu0
      %v954 = vadd.f32 %v784, %v953
      %955 = vmatmul.f32.gmra.mxu0 %v753
      %v956 = vpop.f32.mrf.mxu0
      %v957 = vadd.f32 %v784, %v956
      %958 = vmatmul.f32.gmra.mxu0 %v754
      %v959 = vpop.f32.mrf.mxu0
      %v960 = vadd.f32 %v784, %v959
      %961 = vmatmul.f32.gmra.mxu0 %v755
      %v962 = vpop.f32.mrf.mxu0
      %v963 = vadd.f32 %v784, %v962
      %964 = vmatmul.f32.gmra.mxu0 %v756
      %v965 = vpop.f32.mrf.mxu0
      %v966 = vadd.f32 %v784, %v965
      %967 = vmatmul.f32.gmra.mxu0 %v757
      %v968 = vpop.f32.mrf.mxu0
      %v969 = vadd.f32 %v784, %v968
      %970 = vmatmul.f32.gmra.mxu0 %v758
      %v971 = vpop.f32.mrf.mxu0
      %v972 = vadd.f32 %v784, %v971
      %973 = vmatmul.f32.gmra.mxu0 %v759
      %v974 = vpop.f32.mrf.mxu0
      %v975 = vadd.f32 %v784, %v974
      %976 = vmatmul.f32.gmra.mxu0 %v760
      %v977 = vpop.f32.mrf.mxu0
      %v978 = vadd.f32 %v784, %v977
      %979 = vmatmul.f32.gmra.mxu0 %v761
      %v980 = vpop.f32.mrf.mxu0
      %v981 = vadd.f32 %v784, %v980
      %982 = vmatmul.f32.gmra.mxu0 %v762
      %v983 = vpop.f32.mrf.mxu0
      %v984 = vadd.f32 %v784, %v983
      %985 = vmatmul.f32.gmra.mxu0 %v763
      %v986 = vpop.f32.mrf.mxu0
      %v987 = vadd.f32 %v784, %v986
      %988 = vmatmul.f32.gmra.mxu0 %v764
      %v989 = vpop.f32.mrf.mxu0
      %v990 = vadd.f32 %v784, %v989
      %991 = vmatmul.f32.gmra.mxu0 %v765
      %v992 = vpop.f32.mrf.mxu0
      %v993 = vadd.f32 %v784, %v992
      %994 = vdwg.mxu0
      %vm995 = vcmask 130048
      %996 = vst.msk [vmem:[%s226] sm:$0xff] %vm995, %v804
      %997 = vst.msk [vmem:[%s226 + $0x8] sm:$0xff] %vm995, %v807
      %998 = vst.msk [vmem:[%s226 + $0x10] sm:$0xff] %vm995, %v810
      %999 = vst.msk [vmem:[%s226 + $0x18] sm:$0xff] %vm995, %v813
      %1000 = vst.msk [vmem:[%s226 + $0x20] sm:$0xff] %vm995, %v816
      %1001 = vst.msk [vmem:[%s226 + $0x28] sm:$0xff] %vm995, %v819
      %1002 = vst.msk [vmem:[%s226 + $0x30] sm:$0xff] %vm995, %v822
      %1003 = vst.msk [vmem:[%s226 + $0x38] sm:$0xff] %vm995, %v825
      %1004 = vst.msk [vmem:[%s226 + $0x40] sm:$0xff] %vm995, %v828
      %1005 = vst.msk [vmem:[%s226 + $0x48] sm:$0xff] %vm995, %v831
      %1006 = vst.msk [vmem:[%s226 + $0x50] sm:$0xff] %vm995, %v834
      %1007 = vst.msk [vmem:[%s226 + $0x58] sm:$0xff] %vm995, %v837
      %1008 = vst.msk [vmem:[%s226 + $0x60] sm:$0xff] %vm995, %v840
      %1009 = vst.msk [vmem:[%s226 + $0x68] sm:$0xff] %vm995, %v843
      %1010 = vst.msk [vmem:[%s226 + $0x70] sm:$0xff] %vm995, %v846
      %1011 = vst.msk [vmem:[%s226 + $0x78] sm:$0xff] %vm995, %v849
      %1012 = vst.msk [vmem:[%s226 + $0x80] sm:$0xff] %vm995, %v852
      %1013 = vst.msk [vmem:[%s226 + $0x88] sm:$0xff] %vm995, %v855
      %1014 = vst.msk [vmem:[%s226 + $0x90] sm:$0xff] %vm995, %v858
      %1015 = vst.msk [vmem:[%s226 + $0x98] sm:$0xff] %vm995, %v861
      %1016 = vst.msk [vmem:[%s226 + $0xa0] sm:$0xff] %vm995, %v864
      %1017 = vst.msk [vmem:[%s226 + $0xa8] sm:$0xff] %vm995, %v867
      %1018 = vst.msk [vmem:[%s226 + $0xb0] sm:$0xff] %vm995, %v870
      %1019 = vst.msk [vmem:[%s226 + $0xb8] sm:$0xff] %vm995, %v873
      %1020 = vst.msk [vmem:[%s226 + $0xc0] sm:$0xff] %vm995, %v876
      %1021 = vst.msk [vmem:[%s226 + $0xc8] sm:$0xff] %vm995, %v879
      %1022 = vst.msk [vmem:[%s226 + $0xd0] sm:$0xff] %vm995, %v882
      %1023 = vst.msk [vmem:[%s226 + $0xd8] sm:$0xff] %vm995, %v885
      %1024 = vst.msk [vmem:[%s226 + $0xe0] sm:$0xff] %vm995, %v888
      %1025 = vst.msk [vmem:[%s226 + $0xe8] sm:$0xff] %vm995, %v891
      %1026 = vst.msk [vmem:[%s226 + $0xf0] sm:$0xff] %vm995, %v894
      %1027 = vst.msk [vmem:[%s226 + $0xf8] sm:$0xff] %vm995, %v897
      %1028 = vst.msk [vmem:[%s226 + $0x100] sm:$0xff] %vm995, %v900
      %1029 = vst.msk [vmem:[%s226 + $0x108] sm:$0xff] %vm995, %v903
      %1030 = vst.msk [vmem:[%s226 + $0x110] sm:$0xff] %vm995, %v906
      %1031 = vst.msk [vmem:[%s226 + $0x118] sm:$0xff] %vm995, %v909
      %1032 = vst.msk [vmem:[%s226 + $0x120] sm:$0xff] %vm995, %v912
      %1033 = vst.msk [vmem:[%s226 + $0x128] sm:$0xff] %vm995, %v915
      %1034 = vst.msk [vmem:[%s226 + $0x130] sm:$0xff] %vm995, %v918
      %1035 = vst.msk [vmem:[%s226 + $0x138] sm:$0xff] %vm995, %v921
      %1036 = vst.msk [vmem:[%s226 + $0x140] sm:$0xff] %vm995, %v924
      %1037 = vst.msk [vmem:[%s226 + $0x148] sm:$0xff] %vm995, %v927
      %1038 = vst.msk [vmem:[%s226 + $0x150] sm:$0xff] %vm995, %v930
      %1039 = vst.msk [vmem:[%s226 + $0x158] sm:$0xff] %vm995, %v933
      %1040 = vst.msk [vmem:[%s226 + $0x160] sm:$0xff] %vm995, %v936
      %1041 = vst.msk [vmem:[%s226 + $0x168] sm:$0xff] %vm995, %v939
      %1042 = vst.msk [vmem:[%s226 + $0x170] sm:$0xff] %vm995, %v942
      %1043 = vst.msk [vmem:[%s226 + $0x178] sm:$0xff] %vm995, %v945
      %1044 = vst.msk [vmem:[%s226 + $0x180] sm:$0xff] %vm995, %v948
      %1045 = vst.msk [vmem:[%s226 + $0x188] sm:$0xff] %vm995, %v951
      %1046 = vst.msk [vmem:[%s226 + $0x190] sm:$0xff] %vm995, %v954
      %1047 = vst.msk [vmem:[%s226 + $0x198] sm:$0xff] %vm995, %v957
      %1048 = vst.msk [vmem:[%s226 + $0x1a0] sm:$0xff] %vm995, %v960
      %1049 = vst.msk [vmem:[%s226 + $0x1a8] sm:$0xff] %vm995, %v963
      %1050 = vst.msk [vmem:[%s226 + $0x1b0] sm:$0xff] %vm995, %v966
      %1051 = vst.msk [vmem:[%s226 + $0x1b8] sm:$0xff] %vm995, %v969
      %1052 = vst.msk [vmem:[%s226 + $0x1c0] sm:$0xff] %vm995, %v972
      %1053 = vst.msk [vmem:[%s226 + $0x1c8] sm:$0xff] %vm995, %v975
      %1054 = vst.msk [vmem:[%s226 + $0x1d0] sm:$0xff] %vm995, %v978
      %1055 = vst.msk [vmem:[%s226 + $0x1d8] sm:$0xff] %vm995, %v981
      %1056 = vst.msk [vmem:[%s226 + $0x1e0] sm:$0xff] %vm995, %v984
      %1057 = vst.msk [vmem:[%s226 + $0x1e8] sm:$0xff] %vm995, %v987
      %1058 = vst.msk [vmem:[%s226 + $0x1f0] sm:$0xff] %vm995, %v990
      %1059 = vst.msk [vmem:[%s226 + $0x1f8] sm:$0xff] %vm995, %v993
      %s1060 = smul.u32 64, %s16
      %p1061 = scmp.lt.s32.totalorder %s1060, 127
      %s1062 = scalar_select %p1061, %s1060, 127
      %s1063 = smul.addr %s1062, 8
      %s1064 = scalar_lea.vmem %s5, %s1063
      // Predicated region
      $region41: #{hooked_module_forward.1} parent=39 // pred_check
        %p1065 = pneg %p144
      $region42: #{hooked_module_forward.1} parent=39 // pred_check_branch
        %1067 = sbr.rel (%p1065) target = $region44
      $region43: #{hooked_module_forward.1} parent=39 // pred_region
        %s1068 = smul.u32 64, %s16
      $region44: #{hooked_module_forward.1} parent=39 // pred_fallthru
        _
    $region40: #{hooked_module_forward.1} parent=5 // pred_fallthru
      _
    %p1069 = scmp.le.s32.totalorder 2, %s11
    // Predicated region
    $region45: #{hooked_module_forward.1} parent=5 // pred_check
      %p1070 = pneg %p1069
    $region46: #{hooked_module_forward.1} parent=5 // pred_check_branch
      %1072 = sbr.rel (%p1070) target = $region48
    $region47: #{hooked_module_forward.1} parent=5 // pred_region
      %s1073 = ssub.s32 %s11, 2
      // Predicated region
      $region49: #{hooked_module_forward.1} parent=47 // pred_check
        %p1074 = pneg %p150
      $region50: #{hooked_module_forward.1} parent=47 // pred_check_branch
        %1076 = sbr.rel (%p1074) target = $region52
      $region51: #{hooked_module_forward.1} parent=47 // pred_region
        %s1077 = smul.u32 64, %s17
        %p1078 = scmp.lt.s32.totalorder %s1077, 127
        %s1079 = scalar_select %p1078, %s1077, 127
        %s1080 = smul.addr %s1079, 8
        %s1081 = scalar_lea.vmem %s5, %s1080
      $region52: #{hooked_module_forward.1} parent=47 // pred_fallthru
        _
    $region48: #{hooked_module_forward.1} parent=5 // pred_fallthru
      _
  $region6: #{hooked_module_forward.1} parent=0 // loop_footer
    %s15 = sadd.s32 1, %s11
  $region7: #{hooked_module_forward.1} parent=0 // loop_footer_branch
    %10 = sbr.rel target = $region3
  $region8: #{hooked_module_forward.1} parent=0 // loop_exit
    _

</llo_original>
